<compile_context>
chip_gen: v7x
topology: tpu7x:2x2x1
jax: 0.10.0
libtpu: 0.0.40
codegen_flags: <defaults>
</compile_context>

<pallas_src>
import jax
import jax.numpy as jnp
from jax.experimental import pallas as pl
from jax.experimental.pallas import tpu as pltpu

_LANES = 128          # vreg lane width
_SUBLANES = 8         # vreg sublane depth (f32)
_MAX_BLOCK_ROWS = 1024  # (1024,128) f32 = 512 KiB per single-plane block


def _cdiv(a, b):
    return (a + b - 1) // b


def _round_up(a, b):
    return _cdiv(a, b) * b


def _choose_block_rows(rows):
    """Pick a sublane-aligned block row count, preferring >= 2 grid steps."""
    rows_aligned = _round_up(max(rows, 1), _SUBLANES)
    if rows_aligned <= _SUBLANES:
        return _SUBLANES
    half = _round_up(_cdiv(rows_aligned, 2), _SUBLANES)  # >= 2 grid steps
    return min(_MAX_BLOCK_ROWS, half)


def _pack_x(x, rows_pad):
    """x: (N, 2) f32 -> (2, rows_pad, 128). One transpose + pad pass."""
    n = x.shape[0]
    xt = jnp.transpose(x)                                   # (2, N)
    xt = jnp.pad(xt, ((0, 0), (0, rows_pad * _LANES - n)))  # padded lanes -> NoOp
    return xt.reshape(2, rows_pad, _LANES)


def _pack_vec(v, rows_pad):
    """v: (N,) f32 -> (rows_pad, 128)."""
    n = v.shape[0]
    return jnp.pad(v, (0, rows_pad * _LANES - n)).reshape(rows_pad, _LANES)


def _decision(a, b):
    """+1 for Push, -1 for Pop, 0 for NoOp (elementwise, f32)."""
    t = jnp.float32(0.5)
    is_push = jnp.logical_and(a >= t, a >= b)
    is_pop = jnp.logical_and(b >= t, b > a)
    return is_push.astype(jnp.float32) - is_pop.astype(jnp.float32)


def dfrc_update_kernel(x_ref, state_ref, out_ref):
    """x_ref: (2, BR, 128) [push/pop scores], state_ref/out_ref: (BR, 128)."""
    out_ref[...] = state_ref[...] + _decision(x_ref[0], x_ref[1])


def dfrc_delta_kernel(x_ref, out_ref):
    """Deltas only (state-independent), used for the fused sequential path."""
    out_ref[...] = _decision(x_ref[0], x_ref[1])


def _make_specs(block_rows):
    x_spec = pl.BlockSpec((2, block_rows, _LANES), lambda i: (0, i, 0))
    v_spec = pl.BlockSpec((block_rows, _LANES), lambda i: (i, 0))
    return x_spec, v_spec


@jax.jit
def _dfrc_update(x, state):
    """x: (N, 2) f32, state: (N,) f32 -> (N,) f32 new stack depth."""
    n = x.shape[0]
    rows = _cdiv(n, _LANES)
    block_rows = _choose_block_rows(rows)
    rows_pad = _round_up(_round_up(rows, _SUBLANES), block_rows)
    grid = rows_pad // block_rows

    xp = _pack_x(x, rows_pad)
    sp = _pack_vec(state, rows_pad)
    x_spec, v_spec = _make_specs(block_rows)

    out = pl.pallas_call(
        dfrc_update_kernel,
        out_shape=jax.ShapeDtypeStruct((rows_pad, _LANES), jnp.float32),
        grid=(grid,),
        in_specs=[x_spec, v_spec],
        out_specs=v_spec,
        # State buffer is both input 1 and output 0: updated in place.
        input_output_aliases={1: 0},
        compiler_params=pltpu.CompilerParams(
            dimension_semantics=("parallel",)),
    )(xp, sp)
    return out.reshape(-1)[:n]


@jax.jit
def _dfrc_deltas(x):
    """x: (T, 2) f32 -> (T,) f32 per-decision deltas (+1 / -1 / 0)."""
    n = x.shape[0]
    rows = _cdiv(n, _LANES)
    block_rows = _choose_block_rows(rows)
    rows_pad = _round_up(_round_up(rows, _SUBLANES), block_rows)
    grid = rows_pad // block_rows

    xp = _pack_x(x, rows_pad)
    x_spec, v_spec = _make_specs(block_rows)

    out = pl.pallas_call(
        dfrc_delta_kernel,
        out_shape=jax.ShapeDtypeStruct((rows_pad, _LANES), jnp.float32),
        grid=(grid,),
        in_specs=[x_spec],
        out_specs=v_spec,
        compiler_params=pltpu.CompilerParams(
            dimension_semantics=("parallel",)),
    )(xp)
    return out.reshape(-1)[:n]


def dfrc_forward(x, state):
    """Functional forward.

    x: (2,) or (N, 2) float32 controller scores [push_score, pop_score].
    state: scalar / (1,) / (N,) float32 stack depth(s).
    Returns (N,) float32 new stack depth(s)  (N == 1 for a single decision).
    """
    x = jnp.asarray(x, jnp.float32)
    if x.ndim == 1:
        x = x[None, :]
    state = jnp.asarray(state, jnp.float32).reshape(-1)
    if state.shape[0] == 1 and x.shape[0] > 1:
        state = jnp.broadcast_to(state, (x.shape[0],))
    return _dfrc_update(x, state)


def dfrc_forward_sequence(xs, initial_state=0.0):
    """T sequential decisions fused into one kernel launch.

    xs: (T, 2) float32.  Returns (T,) stack depth AFTER each decision:
        states[t] = initial_state + cumsum(delta)[t].
    """
    xs = jnp.asarray(xs, jnp.float32)
    deltas = _dfrc_deltas(xs)
    return jnp.asarray(initial_state, jnp.float32) + jnp.cumsum(deltas)


class DFRCNN:
    """JAX/Pallas equivalent of the PyTorch DFRCNN module (forward only)."""

    def __init__(self):
        self.stack_depth = jnp.float32(0.0)

    def reset(self):
        self.stack_depth = jnp.float32(0.0)

    def __call__(self, x, y=None):
        if y is None:
            y = jnp.reshape(self.stack_depth, (1,))
        out = dfrc_forward(x, y)
        # torch: reset() then stack_depth += out[0]  ==>  stack_depth = out[0].
        # Kept as a device scalar: no host round-trip.
        self.stack_depth = out[0]
        return out

    def forward_sequence(self, xs):
        """Apply T sequential decisions in one fused launch (delta + cumsum)."""
        states = dfrc_forward_sequence(xs, self.stack_depth)
        self.stack_depth = states[-1]
        return states

    def edit_dnnc_state(self, new_stack_depth):
        self.stack_depth = jnp.float32(new_stack_depth)


def _ref_forward(x, state):
    """Pure-Python reference of DFRC.forward's if/elif chain."""
    a, b = float(x[0]), float(x[1])
    push, pop, op = 0, 0, 'NoOp'
    if a < 0.5:
        push = 0
    elif a >= 0.5 and a < b:
        push, pop, op = 0, 1, 'Pop'
    elif a >= 0.5 and a >= b:
        push, pop, op = 1, 0, 'Push'
    if b < 0.5:
        pop = 0
    elif b >= 0.5 and b < a:
        pop, push, op = 0, 1, 'Push'
    elif b >= 0.5 and b > a:
        pop, push, op = 1, 0, 'Pop'
    if push == 0 and pop == 0:
        op = 'NoOp'
    s = float(state)
    if op == 'Push':
        return s + 1.0
    if op == 'Pop':
        return s - 1.0
    return s


if __name__ == "__main__":
    key = jax.random.PRNGKey(0)
    ok = True

    # --- 1) sequential single-decision use (module interface) ---------------
    model = DFRCNN()
    k1, k2, k3 = jax.random.split(key, 3)
    xs = [
        jnp.array([0.9, 0.3], dtype=jnp.float32),   # Push
        jnp.array([0.2, 0.8], dtype=jnp.float32),   # Pop
        jnp.array([0.1, 0.2], dtype=jnp.float32),   # NoOp
        jnp.array([0.7, 0.7], dtype=jnp.float32),   # tie >= 0.5 -> Push
        jax.random.uniform(k1, (2,), dtype=jnp.float32),
    ]
    state_ref = 0.0
    for x in xs:
        out = jax.block_until_ready(model(x))
        state_ref = _ref_forward([float(x[0]), float(x[1])], state_ref)
        if abs(float(out[0]) - state_ref) > 1e-6:
            ok = False
            print("SEQ MISMATCH", float(out[0]), state_ref)

    # --- 2) batched use: N independent decisions in one lane-dense sweep ----
    N = 256
    kx, ks = jax.random.split(k2)
    xb = jax.random.uniform(kx, (N, 2), dtype=jnp.float32)
    sb = jnp.floor(jax.random.uniform(ks, (N,), dtype=jnp.float32) * 5.0)
    outb = jax.block_until_ready(dfrc_forward(xb, sb))
    for i in range(N):
        exp = _ref_forward([float(xb[i, 0]), float(xb[i, 1])], float(sb[i]))
        if abs(float(outb[i]) - exp) > 1e-6:
            ok = False
            print("BATCH MISMATCH", i, float(outb[i]), exp)
            break

    # --- 3) fused sequential path: T decisions in ONE launch + cumsum -------
    T = 8
    seq_model = DFRCNN()
    seq_model.edit_dnnc_state(2.0)
    xseq = jax.random.uniform(k3, (T, 2), dtype=jnp.float32)
    states = jax.block_until_ready(seq_model.forward_sequence(xseq))
    s_ref = 2.0
    for t in range(T):
        s_ref = _ref_forward([float(xseq[t, 0]), float(xseq[t, 1])], s_ref)
        if abs(float(states[t]) - s_ref) > 1e-6:
            ok = False
            print("SEQFUSED MISMATCH", t, float(states[t]), s_ref)
            break
    if abs(float(seq_model.stack_depth) - s_ref) > 1e-6:
        ok = False
        print("FINAL STATE MISMATCH", float(seq_model.stack_depth), s_ref)

    if ok:
        print("KERNEL_OK")
</pallas_src>

<mosaic_0001>
module attributes {stable_mosaic.version = 11 : i64} {
  func.func @dfrc_update_kernel(%arg0: i32, %arg1: memref<2x8x128xf32, #tpu.memory_space<vmem>>, %arg2: memref<8x128xf32, #tpu.memory_space<vmem>>, %arg3: memref<8x128xf32, #tpu.memory_space<vmem>>) attributes {dimension_semantics = [#tpu.dimension_semantics<parallel>], iteration_bounds = array<i64: 1>, scalar_prefetch = 0 : i64, scratch_operands = 0 : i64, tpu.core_type = #tpu.core_type<tc>, window_params = [{transform_indices = @transform_0, window_bounds = array<i64: 2, 8, 128>}, {transform_indices = @transform_1, window_bounds = array<i64: 8, 128>}, {transform_indices = @transform_2, window_bounds = array<i64: 8, 128>}]} {
    %c0 = arith.constant 0 : index
    %c0_0 = arith.constant 0 : index
    %0 = vector.load %arg2[%c0, %c0_0] : memref<8x128xf32, #tpu.memory_space<vmem>>, vector<8x128xf32>
    %c0_1 = arith.constant 0 : index
    %c0_2 = arith.constant 0 : index
    %c0_3 = arith.constant 0 : index
    %1 = vector.load %arg1[%c0_1, %c0_2, %c0_3] : memref<2x8x128xf32, #tpu.memory_space<vmem>>, vector<1x8x128xf32>
    %2 = vector.shape_cast %1 : vector<1x8x128xf32> to vector<8x128xf32>
    %c1 = arith.constant 1 : index
    %c0_4 = arith.constant 0 : index
    %c0_5 = arith.constant 0 : index
    %3 = vector.load %arg1[%c1, %c0_4, %c0_5] : memref<2x8x128xf32, #tpu.memory_space<vmem>>, vector<1x8x128xf32>
    %4 = vector.shape_cast %3 : vector<1x8x128xf32> to vector<8x128xf32>
    %cst = arith.constant 5.000000e-01 : f32
    %5 = vector.broadcast %cst : f32 to vector<8x128xf32>
    %6 = arith.cmpf oge, %2, %5 : vector<8x128xf32>
    %7 = arith.cmpf oge, %2, %4 : vector<8x128xf32>
    %8 = arith.andi %6, %7 : vector<8x128xi1>
    %cst_6 = arith.constant 5.000000e-01 : f32
    %9 = vector.broadcast %cst_6 : f32 to vector<8x128xf32>
    %10 = arith.cmpf oge, %4, %9 : vector<8x128xf32>
    %11 = arith.cmpf ogt, %4, %2 : vector<8x128xf32>
    %12 = arith.andi %10, %11 : vector<8x128xi1>
    %13 = arith.extui %8 : vector<8x128xi1> to vector<8x128xi32>
    %14 = arith.sitofp %13 : vector<8x128xi32> to vector<8x128xf32>
    %15 = arith.extui %12 : vector<8x128xi1> to vector<8x128xi32>
    %16 = arith.sitofp %15 : vector<8x128xi32> to vector<8x128xf32>
    %17 = arith.subf %14, %16 : vector<8x128xf32>
    %18 = arith.addf %0, %17 : vector<8x128xf32>
    %c0_7 = arith.constant 0 : index
    %c0_8 = arith.constant 0 : index
    %19 = vector.load %arg3[%c0_7, %c0_8] : memref<8x128xf32, #tpu.memory_space<vmem>>, vector<8x128xf32>
    tpu.vector_store %arg3[%c0_7, %c0_8], %18 {strides = array<i32>} : memref<8x128xf32, #tpu.memory_space<vmem>>, vector<8x128xf32>,
    return
  }
  func.func @transform_0(%arg0: i32) -> (i32, i32, i32) {
    %c0_i32 = arith.constant 0 : i32
    %c0_i32_0 = arith.constant 0 : i32
    %c0_i32_1 = arith.constant 0 : i32
    return %c0_i32, %arg0, %c0_i32_0 : i32, i32, i32
  }
  func.func @transform_1(%arg0: i32) -> (i32, i32) {
    %c0_i32 = arith.constant 0 : i32
    %c0_i32_0 = arith.constant 0 : i32
    return %arg0, %c0_i32 : i32, i32
  }
  func.func @transform_2(%arg0: i32) -> (i32, i32) {
    %c0_i32 = arith.constant 0 : i32
    %c0_i32_0 = arith.constant 0 : i32
    return %arg0, %c0_i32 : i32, i32
  }
}

</mosaic_0001>

<llo_original>
// kernel: _dfrc_update.1
$region0: #{_dfrc_update.1}
  #allocation0 [shape = 'u32[]', space=smem, size = 0x4, offset = 0x4, fixed_abs, tag = 'smem constant byte address 0x4 - core index']
  #allocation1 [shape = 'u32[144,128]{1,0:T(1,128)}', space=vmem, size = 0x12000, scoped, tag = 'internal scratch']
  %s0 = inlined_call_operand.vmem [shape: f32[2,8,128], index: 0, kind: input, shape index: {}]
  %s1 = inlined_call_operand.vmem [shape: f32[8,128], index: 1, kind: input, shape index: {}, may-alias: {1,2}]
  %s2 = inlined_call_operand.vmem [shape: f32[8,128], index: 2, kind: output, shape index: {}, may-alias: {1,2}]
  %s3 = sld [smem:[#allocation0]]
  $region18: #{_dfrc_update.1} parent=0
    _
  %s5 = ssub.s32 1, %s3
  %s6 = scalar_select 0, %s5, %s3
  // Predicated region
  $region2: #{_dfrc_update.1} parent=0 // pred_check
    _
  $region3: #{_dfrc_update.1} parent=0 // pred_check_branch
    %8 = sbr.rel (0) target = $region5
  $region4: #{_dfrc_update.1} parent=0 // pred_region
    _
  $region5: #{_dfrc_update.1} parent=0 // pred_fallthru
    _
  // Predicated region
  $region6: #{_dfrc_update.1} parent=0 // pred_check
    _
  $region7: #{_dfrc_update.1} parent=0 // pred_check_branch
    %10 = sbr.rel (0) target = $region9
  $region8: #{_dfrc_update.1} parent=0 // pred_region
    _
  $region9: #{_dfrc_update.1} parent=0 // pred_fallthru
    _
  %v11 = vld [vmem:[%s1] sm:$0xff]
  %v12 = vld [vmem:[%s0] sm:$0xff]
  %s13 = scalar_lea.vmem %s0, 8
  %v14 = vld [vmem:[%s13] sm:$0xff]
  %vm15 = vcmp.ge.f32.partialorder %v12, 0.5
  %vm16 = vcmp.ge.f32.partialorder %v12, %v14
  %vm17 = vmand %vm15, %vm16
  %vm18 = vcmp.ge.f32.partialorder %v14, 0.5
  %vm19 = vcmp.gt.f32.partialorder %v14, %v12
  %vm20 = vmand %vm18, %vm19
  %v21 = vsel %vm17, 1, 0
  %v22 = vcvt.s32.f32 %v21
  %v23 = vsel %vm20, 1, 0
  %v24 = vcvt.s32.f32 %v23
  %v25 = vsub.f32 %v22, %v24
  %v26 = vadd.f32 %v11, %v25
  %27 = vst [vmem:[%s2] sm:$0xff] %v26
  // Predicated region
  $region10: #{_dfrc_update.1} parent=0 // pred_check
    _
  $region11: #{_dfrc_update.1} parent=0 // pred_check_branch
    %29 = sbr.rel (0) target = $region13
  $region12: #{_dfrc_update.1} parent=0 // pred_region
    _
  $region13: #{_dfrc_update.1} parent=0 // pred_fallthru
    _
  // Predicated region
  $region14: #{_dfrc_update.1} parent=0 // pred_check
    _
  $region15: #{_dfrc_update.1} parent=0 // pred_check_branch
    %31 = sbr.rel (0) target = $region17
  $region16: #{_dfrc_update.1} parent=0 // pred_region
    _
  $region17: #{_dfrc_update.1} parent=0 // pred_fallthru
    _

</llo_original>
